<compile_context>
chip_gen: v7x
topology: tpu7x:2x2x1
jax: 0.10.0
libtpu: 0.0.40
codegen_flags: <defaults>
</compile_context>

<pallas_src>
import numpy as np
import jax
import jax.numpy as jnp
from jax.experimental import pallas as pl
from jax.experimental.pallas import tpu as pltpu


def _round_up(x, m):
    return ((x + m - 1) // m) * m


# ----------------------------------------------------------------------------
# Fused kernel:
#   (1) norm_spkr        = F.normalize(speaker_embeddings, dim=-1)
#   (2) speaker_embedding = sid_embedding(sids)          (row gather)
#   (3) phone_features    = phone_embedding(phone_ids)   (row gather)
# ----------------------------------------------------------------------------
def _fused_tts_frontend_kernel(sids_ref, phone_ids_ref,          # SMEM int32
                               spkr_ref, sid_tab_ref, phone_tab_ref,  # VMEM f32
                               norm_ref, sid_emb_ref, phone_emb_ref):  # VMEM out
    # (1) row-wise L2 normalize.  rsqrt(max(sumsq, eps^2)) == 1 / max(||x||, eps)
    # with eps = 1e-12, matching torch.nn.functional.normalize.  rsqrt issues
    # on the EUP slot (otherwise idle here) instead of sqrt + divide on VALU.
    x = spkr_ref[...].astype(jnp.float32)
    sumsq = jnp.sum(x * x, axis=-1, keepdims=True)        # XLU reduce
    inv = jax.lax.rsqrt(jnp.maximum(sumsq, 1e-24))        # EUP
    norm_ref[...] = (x * inv).astype(norm_ref.dtype)

    # (2) sid embedding gather: ids are scalars in SMEM, each row is a dynamic
    # sublane-slice load from the VMEM-resident table (exact f32 copy).
    for i in range(sid_emb_ref.shape[0]):                 # static, small
        sid = sids_ref[i]
        sid_emb_ref[pl.ds(i, 1), :] = sid_tab_ref[pl.ds(sid, 1), :]

    # (3) phone embedding gather (same pattern; padding rows use padding_idx,
    # whose table row is zero, matching nn.Embedding(padding_idx=...)).
    for i in range(phone_emb_ref.shape[0]):               # static, small
        pid = phone_ids_ref[i]
        phone_emb_ref[pl.ds(i, 1), :] = phone_tab_ref[pl.ds(pid, 1), :]


def tts_frontend_fused(spkr_padded, sids_padded, phone_ids_padded,
                       sid_table, phone_table):
    """Single pallas_call for the whole computable front-end.

    spkr_padded      : (B_pad, spkr_dim) f32, B_pad % 8 == 0
    sids_padded      : (B_pad,)          int32
    phone_ids_padded : (N_pad,)          int32, N_pad % 8 == 0
    sid_table        : (300, H)          f32
    phone_table      : (V, H)            f32
    """
    b_pad, spkr_dim = spkr_padded.shape
    h = sid_table.shape[1]
    n_pad = phone_ids_padded.shape[0]

    return pl.pallas_call(
        _fused_tts_frontend_kernel,
        out_shape=(
            jax.ShapeDtypeStruct((b_pad, spkr_dim), spkr_padded.dtype),
            jax.ShapeDtypeStruct((b_pad, h), sid_table.dtype),
            jax.ShapeDtypeStruct((n_pad, h), phone_table.dtype),
        ),
        in_specs=[
            pl.BlockSpec(memory_space=pltpu.MemorySpace.SMEM),   # sids
            pl.BlockSpec(memory_space=pltpu.MemorySpace.SMEM),   # phone ids
            pl.BlockSpec(memory_space=pltpu.MemorySpace.VMEM),   # speaker emb
            pl.BlockSpec(memory_space=pltpu.MemorySpace.VMEM),   # sid table
            pl.BlockSpec(memory_space=pltpu.MemorySpace.VMEM),   # phone table
        ],
        out_specs=(
            pl.BlockSpec(memory_space=pltpu.MemorySpace.VMEM),
            pl.BlockSpec(memory_space=pltpu.MemorySpace.VMEM),
            pl.BlockSpec(memory_space=pltpu.MemorySpace.VMEM),
        ),
    )(sids_padded, phone_ids_padded, spkr_padded, sid_table, phone_table)


# ----------------------------------------------------------------------------
# Wav2TTS_infer forward (computable portion)
# ----------------------------------------------------------------------------
class Wav2TTSInferPallas:
    def __init__(self, key, hidden_size=128, spkr_dim=256, phoneset=None):
        if phoneset is None:
            # synthetic phoneset; '_' is the padding symbol, index 0
            phoneset = ['_'] + [f"p{i}" for i in range(1, 40)]
        self.phoneset = phoneset
        # precomputed dict -> O(1) host-side lookups (no .index() in hot path)
        self.phone_to_id = {ph: i for i, ph in enumerate(phoneset)}
        self.hidden_size = hidden_size
        self.spkr_dim = spkr_dim
        self.pad_idx = self.phone_to_id['_']

        k1, k2 = jax.random.split(key, 2)
        # nn.Embedding default init: N(0, 1); tables stay device-resident.
        self.sid_embedding = jax.random.normal(
            k1, (300, hidden_size), dtype=jnp.float32)
        phone_tab = jax.random.normal(
            k2, (len(phoneset), hidden_size), dtype=jnp.float32)
        # padding_idx row is zero-initialized in nn.Embedding(padding_idx=...)
        self.phone_embedding = phone_tab.at[self.pad_idx].set(0.0)

    def forward(self, speaker_embeddings, sids, phones):
        """
        speaker_embeddings : (B, spkr_dim) f32 — stands in for the output of
            the external pyannote speaker-embedding model (not translatable).
        sids   : list[int] of length B
        phones : list of lists of phoneme symbols
        """
        batch_size = speaker_embeddings.shape[0]
        assert len(sids) == batch_size and len(phones) == batch_size

        # ---- host glue: build padded phone-id matrix + masks in one pass ----
        phone_idx_lists = [
            np.fromiter((self.phone_to_id[ph] for ph in phone),
                        dtype=np.int32, count=len(phone))
            for phone in phones
        ]
        maxlen = max(len(x) for x in phone_idx_lists)
        phone_ids_np = np.full((batch_size, maxlen), self.pad_idx, dtype=np.int32)
        phone_masks_np = np.ones((batch_size, maxlen), dtype=bool)
        for i, ph in enumerate(phone_idx_lists):
            phone_ids_np[i, :len(ph)] = ph
            phone_masks_np[i, :len(ph)] = False

        # ---- pad B and N to multiples of 8 (sublane-dense stores) ----
        b_pad = _round_up(batch_size, 8)
        n = batch_size * maxlen
        n_pad = _round_up(n, 8)

        sids_np = np.zeros((b_pad,), dtype=np.int32)
        sids_np[:batch_size] = np.asarray(sids, dtype=np.int32)
        flat_ids_np = np.full((n_pad,), self.pad_idx, dtype=np.int32)
        flat_ids_np[:n] = phone_ids_np.reshape(-1)

        # one H2D copy per small array
        sids_dev = jnp.asarray(sids_np)
        flat_ids_dev = jnp.asarray(flat_ids_np)
        spkr_pad = jnp.pad(speaker_embeddings.astype(jnp.float32),
                           ((0, b_pad - batch_size), (0, 0)))

        # ---- single fused Pallas launch ----
        norm_pad, sid_emb_pad, phone_emb_pad = tts_frontend_fused(
            spkr_pad, sids_dev, flat_ids_dev,
            self.sid_embedding, self.phone_embedding)

        norm_spkr = norm_pad[:batch_size]                       # (B, spkr_dim)
        speaker_embedding = sid_emb_pad[:batch_size]            # (B, H)
        phone_features = phone_emb_pad[:n].reshape(
            batch_size, maxlen, self.hidden_size)               # (B, L, H)
        phone_masks = jnp.asarray(phone_masks_np)               # (B, L)

        # TODO(synk): TTSDecoder.inference_topkp_sampling_batch (autoregressive
        # top-k/top-p sampling), the pyannote speaker-embedding model and the
        # Vocoder encode/decode are external modules with no definition in the
        # reference source.
        return {
            "norm_spkr": norm_spkr,
            "speaker_embedding": speaker_embedding,
            "phone_features": phone_features,
            "phone_masks": phone_masks,
        }


if __name__ == "__main__":
    key = jax.random.PRNGKey(0)
    k_model, k_spkr = jax.random.split(key)

    model = Wav2TTSInferPallas(k_model, hidden_size=128, spkr_dim=256)

    batch = 2
    # stand-in for the external speaker-embedding model output
    speaker_embeddings = jax.random.normal(
        k_spkr, (batch, model.spkr_dim), dtype=jnp.float32)
    sids = [3, 7]
    phones = [
        ['p1', 'p2', 'p3', 'p4', 'p5', 'p6'],
        ['p7', 'p8', 'p9', 'p10'],
    ]

    out = model.forward(speaker_embeddings, sids, phones)
    jax.block_until_ready(out)

    # light sanity checks against plain-JAX references
    ref_norm = speaker_embeddings / jnp.maximum(
        jnp.linalg.norm(speaker_embeddings, axis=-1, keepdims=True), 1e-12)
    assert np.allclose(np.asarray(out["norm_spkr"]), np.asarray(ref_norm),
                       atol=1e-4, rtol=1e-4)
    ref_sid = np.asarray(model.sid_embedding)[np.array(sids)]
    assert np.allclose(np.asarray(out["speaker_embedding"]), ref_sid, atol=1e-6)
    ref_phone = np.asarray(model.phone_embedding)
    expect_row = ref_phone[model.phone_to_id['p1']]
    assert np.allclose(np.asarray(out["phone_features"])[0, 0], expect_row,
                       atol=1e-6)
    assert out["phone_features"].shape == (2, 6, 128)
    # padded positions must equal the (zero) padding_idx embedding row
    assert np.allclose(np.asarray(out["phone_features"])[1, 4:], 0.0, atol=1e-6)
    assert bool(out["phone_masks"][1, 4]) and not bool(out["phone_masks"][0, 5])

    print("KERNEL_OK")
</pallas_src>

<mosaic_0001>
module attributes {stable_mosaic.version = 11 : i64} {
  func.func @_fused_tts_frontend_kernel(%arg0: memref<8xi32, #tpu.memory_space<smem>>, %arg1: memref<16xi32, #tpu.memory_space<smem>>, %arg2: memref<8x256xf32, #tpu.memory_space<vmem>>, %arg3: memref<300x128xf32, #tpu.memory_space<vmem>>, %arg4: memref<40x128xf32, #tpu.memory_space<vmem>>, %arg5: memref<8x256xf32, #tpu.memory_space<vmem>>, %arg6: memref<8x128xf32, #tpu.memory_space<vmem>>, %arg7: memref<16x128xf32, #tpu.memory_space<vmem>>) attributes {dimension_semantics = [], scalar_prefetch = 0 : i64, scratch_operands = 0 : i64, tpu.core_type = #tpu.core_type<tc>} {
    %c0 = arith.constant 0 : index
    %c0_0 = arith.constant 0 : index
    %0 = vector.load %arg2[%c0, %c0_0] : memref<8x256xf32, #tpu.memory_space<vmem>>, vector<8x256xf32>
    %1 = arith.mulf %0, %0 : vector<8x256xf32>
    %cst = arith.constant dense<0.000000e+00> : vector<8xf32>
    %2 = vector.multi_reduction <add>, %1, %cst [1] : vector<8x256xf32> to vector<8xf32>
    %3 = vector.shape_cast %2 : vector<8xf32> to vector<8x1xf32>
    %cst_1 = arith.constant 1.000000e-24 : f32
    %4 = vector.broadcast %cst_1 : f32 to vector<8x1xf32>
    %5 = arith.maximumf %3, %4 : vector<8x1xf32>
    %6 = math.rsqrt %5 : vector<8x1xf32>
    %7 = vector.broadcast %6 : vector<8x1xf32> to vector<8x256xf32>
    %8 = arith.mulf %0, %7 : vector<8x256xf32>
    %c0_2 = arith.constant 0 : index
    %c0_3 = arith.constant 0 : index
    %9 = vector.load %arg5[%c0_2, %c0_3] : memref<8x256xf32, #tpu.memory_space<vmem>>, vector<8x256xf32>
    tpu.vector_store %arg5[%c0_2, %c0_3], %8 {strides = array<i32>} : memref<8x256xf32, #tpu.memory_space<vmem>>, vector<8x256xf32>,
    %c0_4 = arith.constant 0 : index
    %10 = memref.load %arg0[%c0_4] : memref<8xi32, #tpu.memory_space<smem>>
    %11 = arith.index_cast %10 : i32 to index
    %c0_5 = arith.constant 0 : index
    %12 = vector.load %arg3[%11, %c0_5] : memref<300x128xf32, #tpu.memory_space<vmem>>, vector<1x128xf32>
    %c0_6 = arith.constant 0 : index
    %c0_7 = arith.constant 0 : index
    %13 = vector.load %arg6[%c0_6, %c0_7] : memref<8x128xf32, #tpu.memory_space<vmem>>, vector<1x128xf32>
    tpu.vector_store %arg6[%c0_6, %c0_7], %12 {strides = array<i32>} : memref<8x128xf32, #tpu.memory_space<vmem>>, vector<1x128xf32>,
    %c1 = arith.constant 1 : index
    %14 = memref.load %arg0[%c1] : memref<8xi32, #tpu.memory_space<smem>>
    %15 = arith.index_cast %14 : i32 to index
    %c0_8 = arith.constant 0 : index
    %16 = vector.load %arg3[%15, %c0_8] : memref<300x128xf32, #tpu.memory_space<vmem>>, vector<1x128xf32>
    %c1_9 = arith.constant 1 : index
    %c0_10 = arith.constant 0 : index
    %17 = vector.load %arg6[%c1_9, %c0_10] : memref<8x128xf32, #tpu.memory_space<vmem>>, vector<1x128xf32>
    tpu.vector_store %arg6[%c1_9, %c0_10], %16 {strides = array<i32>} : memref<8x128xf32, #tpu.memory_space<vmem>>, vector<1x128xf32>,
    %c2 = arith.constant 2 : index
    %18 = memref.load %arg0[%c2] : memref<8xi32, #tpu.memory_space<smem>>
    %19 = arith.index_cast %18 : i32 to index
    %c0_11 = arith.constant 0 : index
    %20 = vector.load %arg3[%19, %c0_11] : memref<300x128xf32, #tpu.memory_space<vmem>>, vector<1x128xf32>
    %c2_12 = arith.constant 2 : index
    %c0_13 = arith.constant 0 : index
    %21 = vector.load %arg6[%c2_12, %c0_13] : memref<8x128xf32, #tpu.memory_space<vmem>>, vector<1x128xf32>
    tpu.vector_store %arg6[%c2_12, %c0_13], %20 {strides = array<i32>} : memref<8x128xf32, #tpu.memory_space<vmem>>, vector<1x128xf32>,
    %c3 = arith.constant 3 : index
    %22 = memref.load %arg0[%c3] : memref<8xi32, #tpu.memory_space<smem>>
    %23 = arith.index_cast %22 : i32 to index
    %c0_14 = arith.constant 0 : index
    %24 = vector.load %arg3[%23, %c0_14] : memref<300x128xf32, #tpu.memory_space<vmem>>, vector<1x128xf32>
    %c3_15 = arith.constant 3 : index
    %c0_16 = arith.constant 0 : index
    %25 = vector.load %arg6[%c3_15, %c0_16] : memref<8x128xf32, #tpu.memory_space<vmem>>, vector<1x128xf32>
    tpu.vector_store %arg6[%c3_15, %c0_16], %24 {strides = array<i32>} : memref<8x128xf32, #tpu.memory_space<vmem>>, vector<1x128xf32>,
    %c4 = arith.constant 4 : index
    %26 = memref.load %arg0[%c4] : memref<8xi32, #tpu.memory_space<smem>>
    %27 = arith.index_cast %26 : i32 to index
    %c0_17 = arith.constant 0 : index
    %28 = vector.load %arg3[%27, %c0_17] : memref<300x128xf32, #tpu.memory_space<vmem>>, vector<1x128xf32>
    %c4_18 = arith.constant 4 : index
    %c0_19 = arith.constant 0 : index
    %29 = vector.load %arg6[%c4_18, %c0_19] : memref<8x128xf32, #tpu.memory_space<vmem>>, vector<1x128xf32>
    tpu.vector_store %arg6[%c4_18, %c0_19], %28 {strides = array<i32>} : memref<8x128xf32, #tpu.memory_space<vmem>>, vector<1x128xf32>,
    %c5 = arith.constant 5 : index
    %30 = memref.load %arg0[%c5] : memref<8xi32, #tpu.memory_space<smem>>
    %31 = arith.index_cast %30 : i32 to index
    %c0_20 = arith.constant 0 : index
    %32 = vector.load %arg3[%31, %c0_20] : memref<300x128xf32, #tpu.memory_space<vmem>>, vector<1x128xf32>
    %c5_21 = arith.constant 5 : index
    %c0_22 = arith.constant 0 : index
    %33 = vector.load %arg6[%c5_21, %c0_22] : memref<8x128xf32, #tpu.memory_space<vmem>>, vector<1x128xf32>
    tpu.vector_store %arg6[%c5_21, %c0_22], %32 {strides = array<i32>} : memref<8x128xf32, #tpu.memory_space<vmem>>, vector<1x128xf32>,
    %c6 = arith.constant 6 : index
    %34 = memref.load %arg0[%c6] : memref<8xi32, #tpu.memory_space<smem>>
    %35 = arith.index_cast %34 : i32 to index
    %c0_23 = arith.constant 0 : index
    %36 = vector.load %arg3[%35, %c0_23] : memref<300x128xf32, #tpu.memory_space<vmem>>, vector<1x128xf32>
    %c6_24 = arith.constant 6 : index
    %c0_25 = arith.constant 0 : index
    %37 = vector.load %arg6[%c6_24, %c0_25] : memref<8x128xf32, #tpu.memory_space<vmem>>, vector<1x128xf32>
    tpu.vector_store %arg6[%c6_24, %c0_25], %36 {strides = array<i32>} : memref<8x128xf32, #tpu.memory_space<vmem>>, vector<1x128xf32>,
    %c7 = arith.constant 7 : index
    %38 = memref.load %arg0[%c7] : memref<8xi32, #tpu.memory_space<smem>>
    %39 = arith.index_cast %38 : i32 to index
    %c0_26 = arith.constant 0 : index
    %40 = vector.load %arg3[%39, %c0_26] : memref<300x128xf32, #tpu.memory_space<vmem>>, vector<1x128xf32>
    %c7_27 = arith.constant 7 : index
    %c0_28 = arith.constant 0 : index
    %41 = vector.load %arg6[%c7_27, %c0_28] : memref<8x128xf32, #tpu.memory_space<vmem>>, vector<1x128xf32>
    tpu.vector_store %arg6[%c7_27, %c0_28], %40 {strides = array<i32>} : memref<8x128xf32, #tpu.memory_space<vmem>>, vector<1x128xf32>,
    %c0_29 = arith.constant 0 : index
    %42 = memref.load %arg1[%c0_29] : memref<16xi32, #tpu.memory_space<smem>>
    %43 = arith.index_cast %42 : i32 to index
    %c0_30 = arith.constant 0 : index
    %44 = vector.load %arg4[%43, %c0_30] : memref<40x128xf32, #tpu.memory_space<vmem>>, vector<1x128xf32>
    %c0_31 = arith.constant 0 : index
    %c0_32 = arith.constant 0 : index
    %45 = vector.load %arg7[%c0_31, %c0_32] : memref<16x128xf32, #tpu.memory_space<vmem>>, vector<1x128xf32>
    tpu.vector_store %arg7[%c0_31, %c0_32], %44 {strides = array<i32>} : memref<16x128xf32, #tpu.memory_space<vmem>>, vector<1x128xf32>,
    %c1_33 = arith.constant 1 : index
    %46 = memref.load %arg1[%c1_33] : memref<16xi32, #tpu.memory_space<smem>>
    %47 = arith.index_cast %46 : i32 to index
    %c0_34 = arith.constant 0 : index
    %48 = vector.load %arg4[%47, %c0_34] : memref<40x128xf32, #tpu.memory_space<vmem>>, vector<1x128xf32>
    %c1_35 = arith.constant 1 : index
    %c0_36 = arith.constant 0 : index
    %49 = vector.load %arg7[%c1_35, %c0_36] : memref<16x128xf32, #tpu.memory_space<vmem>>, vector<1x128xf32>
    tpu.vector_store %arg7[%c1_35, %c0_36], %48 {strides = array<i32>} : memref<16x128xf32, #tpu.memory_space<vmem>>, vector<1x128xf32>,
    %c2_37 = arith.constant 2 : index
    %50 = memref.load %arg1[%c2_37] : memref<16xi32, #tpu.memory_space<smem>>
    %51 = arith.index_cast %50 : i32 to index
    %c0_38 = arith.constant 0 : index
    %52 = vector.load %arg4[%51, %c0_38] : memref<40x128xf32, #tpu.memory_space<vmem>>, vector<1x128xf32>
    %c2_39 = arith.constant 2 : index
    %c0_40 = arith.constant 0 : index
    %53 = vector.load %arg7[%c2_39, %c0_40] : memref<16x128xf32, #tpu.memory_space<vmem>>, vector<1x128xf32>
    tpu.vector_store %arg7[%c2_39, %c0_40], %52 {strides = array<i32>} : memref<16x128xf32, #tpu.memory_space<vmem>>, vector<1x128xf32>,
    %c3_41 = arith.constant 3 : index
    %54 = memref.load %arg1[%c3_41] : memref<16xi32, #tpu.memory_space<smem>>
    %55 = arith.index_cast %54 : i32 to index
    %c0_42 = arith.constant 0 : index
    %56 = vector.load %arg4[%55, %c0_42] : memref<40x128xf32, #tpu.memory_space<vmem>>, vector<1x128xf32>
    %c3_43 = arith.constant 3 : index
    %c0_44 = arith.constant 0 : index
    %57 = vector.load %arg7[%c3_43, %c0_44] : memref<16x128xf32, #tpu.memory_space<vmem>>, vector<1x128xf32>
    tpu.vector_store %arg7[%c3_43, %c0_44], %56 {strides = array<i32>} : memref<16x128xf32, #tpu.memory_space<vmem>>, vector<1x128xf32>,
    %c4_45 = arith.constant 4 : index
    %58 = memref.load %arg1[%c4_45] : memref<16xi32, #tpu.memory_space<smem>>
    %59 = arith.index_cast %58 : i32 to index
    %c0_46 = arith.constant 0 : index
    %60 = vector.load %arg4[%59, %c0_46] : memref<40x128xf32, #tpu.memory_space<vmem>>, vector<1x128xf32>
    %c4_47 = arith.constant 4 : index
    %c0_48 = arith.constant 0 : index
    %61 = vector.load %arg7[%c4_47, %c0_48] : memref<16x128xf32, #tpu.memory_space<vmem>>, vector<1x128xf32>
    tpu.vector_store %arg7[%c4_47, %c0_48], %60 {strides = array<i32>} : memref<16x128xf32, #tpu.memory_space<vmem>>, vector<1x128xf32>,
    %c5_49 = arith.constant 5 : index
    %62 = memref.load %arg1[%c5_49] : memref<16xi32, #tpu.memory_space<smem>>
    %63 = arith.index_cast %62 : i32 to index
    %c0_50 = arith.constant 0 : index
    %64 = vector.load %arg4[%63, %c0_50] : memref<40x128xf32, #tpu.memory_space<vmem>>, vector<1x128xf32>
    %c5_51 = arith.constant 5 : index
    %c0_52 = arith.constant 0 : index
    %65 = vector.load %arg7[%c5_51, %c0_52] : memref<16x128xf32, #tpu.memory_space<vmem>>, vector<1x128xf32>
    tpu.vector_store %arg7[%c5_51, %c0_52], %64 {strides = array<i32>} : memref<16x128xf32, #tpu.memory_space<vmem>>, vector<1x128xf32>,
    %c6_53 = arith.constant 6 : index
    %66 = memref.load %arg1[%c6_53] : memref<16xi32, #tpu.memory_space<smem>>
    %67 = arith.index_cast %66 : i32 to index
    %c0_54 = arith.constant 0 : index
    %68 = vector.load %arg4[%67, %c0_54] : memref<40x128xf32, #tpu.memory_space<vmem>>, vector<1x128xf32>
    %c6_55 = arith.constant 6 : index
    %c0_56 = arith.constant 0 : index
    %69 = vector.load %arg7[%c6_55, %c0_56] : memref<16x128xf32, #tpu.memory_space<vmem>>, vector<1x128xf32>
    tpu.vector_store %arg7[%c6_55, %c0_56], %68 {strides = array<i32>} : memref<16x128xf32, #tpu.memory_space<vmem>>, vector<1x128xf32>,
    %c7_57 = arith.constant 7 : index
    %70 = memref.load %arg1[%c7_57] : memref<16xi32, #tpu.memory_space<smem>>
    %71 = arith.index_cast %70 : i32 to index
    %c0_58 = arith.constant 0 : index
    %72 = vector.load %arg4[%71, %c0_58] : memref<40x128xf32, #tpu.memory_space<vmem>>, vector<1x128xf32>
    %c7_59 = arith.constant 7 : index
    %c0_60 = arith.constant 0 : index
    %73 = vector.load %arg7[%c7_59, %c0_60] : memref<16x128xf32, #tpu.memory_space<vmem>>, vector<1x128xf32>
    tpu.vector_store %arg7[%c7_59, %c0_60], %72 {strides = array<i32>} : memref<16x128xf32, #tpu.memory_space<vmem>>, vector<1x128xf32>,
    %c8 = arith.constant 8 : index
    %74 = memref.load %arg1[%c8] : memref<16xi32, #tpu.memory_space<smem>>
    %75 = arith.index_cast %74 : i32 to index
    %c0_61 = arith.constant 0 : index
    %76 = vector.load %arg4[%75, %c0_61] : memref<40x128xf32, #tpu.memory_space<vmem>>, vector<1x128xf32>
    %c8_62 = arith.constant 8 : index
    %c0_63 = arith.constant 0 : index
    %77 = vector.load %arg7[%c8_62, %c0_63] : memref<16x128xf32, #tpu.memory_space<vmem>>, vector<1x128xf32>
    tpu.vector_store %arg7[%c8_62, %c0_63], %76 {strides = array<i32>} : memref<16x128xf32, #tpu.memory_space<vmem>>, vector<1x128xf32>,
    %c9 = arith.constant 9 : index
    %78 = memref.load %arg1[%c9] : memref<16xi32, #tpu.memory_space<smem>>
    %79 = arith.index_cast %78 : i32 to index
    %c0_64 = arith.constant 0 : index
    %80 = vector.load %arg4[%79, %c0_64] : memref<40x128xf32, #tpu.memory_space<vmem>>, vector<1x128xf32>
    %c9_65 = arith.constant 9 : index
    %c0_66 = arith.constant 0 : index
    %81 = vector.load %arg7[%c9_65, %c0_66] : memref<16x128xf32, #tpu.memory_space<vmem>>, vector<1x128xf32>
    tpu.vector_store %arg7[%c9_65, %c0_66], %80 {strides = array<i32>} : memref<16x128xf32, #tpu.memory_space<vmem>>, vector<1x128xf32>,
    %c10 = arith.constant 10 : index
    %82 = memref.load %arg1[%c10] : memref<16xi32, #tpu.memory_space<smem>>
    %83 = arith.index_cast %82 : i32 to index
    %c0_67 = arith.constant 0 : index
    %84 = vector.load %arg4[%83, %c0_67] : memref<40x128xf32, #tpu.memory_space<vmem>>, vector<1x128xf32>
    %c10_68 = arith.constant 10 : index
    %c0_69 = arith.constant 0 : index
    %85 = vector.load %arg7[%c10_68, %c0_69] : memref<16x128xf32, #tpu.memory_space<vmem>>, vector<1x128xf32>
    tpu.vector_store %arg7[%c10_68, %c0_69], %84 {strides = array<i32>} : memref<16x128xf32, #tpu.memory_space<vmem>>, vector<1x128xf32>,
    %c11 = arith.constant 11 : index
    %86 = memref.load %arg1[%c11] : memref<16xi32, #tpu.memory_space<smem>>
    %87 = arith.index_cast %86 : i32 to index
    %c0_70 = arith.constant 0 : index
    %88 = vector.load %arg4[%87, %c0_70] : memref<40x128xf32, #tpu.memory_space<vmem>>, vector<1x128xf32>
    %c11_71 = arith.constant 11 : index
    %c0_72 = arith.constant 0 : index
    %89 = vector.load %arg7[%c11_71, %c0_72] : memref<16x128xf32, #tpu.memory_space<vmem>>, vector<1x128xf32>
    tpu.vector_store %arg7[%c11_71, %c0_72], %88 {strides = array<i32>} : memref<16x128xf32, #tpu.memory_space<vmem>>, vector<1x128xf32>,
    %c12 = arith.constant 12 : index
    %90 = memref.load %arg1[%c12] : memref<16xi32, #tpu.memory_space<smem>>
    %91 = arith.index_cast %90 : i32 to index
    %c0_73 = arith.constant 0 : index
    %92 = vector.load %arg4[%91, %c0_73] : memref<40x128xf32, #tpu.memory_space<vmem>>, vector<1x128xf32>
    %c12_74 = arith.constant 12 : index
    %c0_75 = arith.constant 0 : index
    %93 = vector.load %arg7[%c12_74, %c0_75] : memref<16x128xf32, #tpu.memory_space<vmem>>, vector<1x128xf32>
    tpu.vector_store %arg7[%c12_74, %c0_75], %92 {strides = array<i32>} : memref<16x128xf32, #tpu.memory_space<vmem>>, vector<1x128xf32>,
    %c13 = arith.constant 13 : index
    %94 = memref.load %arg1[%c13] : memref<16xi32, #tpu.memory_space<smem>>
    %95 = arith.index_cast %94 : i32 to index
    %c0_76 = arith.constant 0 : index
    %96 = vector.load %arg4[%95, %c0_76] : memref<40x128xf32, #tpu.memory_space<vmem>>, vector<1x128xf32>
    %c13_77 = arith.constant 13 : index
    %c0_78 = arith.constant 0 : index
    %97 = vector.load %arg7[%c13_77, %c0_78] : memref<16x128xf32, #tpu.memory_space<vmem>>, vector<1x128xf32>
    tpu.vector_store %arg7[%c13_77, %c0_78], %96 {strides = array<i32>} : memref<16x128xf32, #tpu.memory_space<vmem>>, vector<1x128xf32>,
    %c14 = arith.constant 14 : index
    %98 = memref.load %arg1[%c14] : memref<16xi32, #tpu.memory_space<smem>>
    %99 = arith.index_cast %98 : i32 to index
    %c0_79 = arith.constant 0 : index
    %100 = vector.load %arg4[%99, %c0_79] : memref<40x128xf32, #tpu.memory_space<vmem>>, vector<1x128xf32>
    %c14_80 = arith.constant 14 : index
    %c0_81 = arith.constant 0 : index
    %101 = vector.load %arg7[%c14_80, %c0_81] : memref<16x128xf32, #tpu.memory_space<vmem>>, vector<1x128xf32>
    tpu.vector_store %arg7[%c14_80, %c0_81], %100 {strides = array<i32>} : memref<16x128xf32, #tpu.memory_space<vmem>>, vector<1x128xf32>,
    %c15 = arith.constant 15 : index
    %102 = memref.load %arg1[%c15] : memref<16xi32, #tpu.memory_space<smem>>
    %103 = arith.index_cast %102 : i32 to index
    %c0_82 = arith.constant 0 : index
    %104 = vector.load %arg4[%103, %c0_82] : memref<40x128xf32, #tpu.memory_space<vmem>>, vector<1x128xf32>
    %c15_83 = arith.constant 15 : index
    %c0_84 = arith.constant 0 : index
    %105 = vector.load %arg7[%c15_83, %c0_84] : memref<16x128xf32, #tpu.memory_space<vmem>>, vector<1x128xf32>
    tpu.vector_store %arg7[%c15_83, %c0_84], %104 {strides = array<i32>} : memref<16x128xf32, #tpu.memory_space<vmem>>, vector<1x128xf32>,
    return
  }
}

</mosaic_0001>

<llo_original>
// kernel: tpu_custom_call.1
$region0: #{tpu_custom_call.1}
  #allocation0 [shape = 'u32[]', space=smem, size = 0x4, offset = 0x4, fixed_abs, tag = 'smem constant byte address 0x4 - core index']
  #allocation1 [shape = 'u32[144,128]{1,0:T(1,128)}', space=vmem, size = 0x12000, scoped, tag = 'internal scratch']
  %s0 = inlined_call_operand.hbm [shape: s32[8], index: 0, kind: input, shape index: {}]
  %s1 = inlined_call_operand.vmem [shape: s32[16], index: 1, kind: input, shape index: {}]
  %s2 = inlined_call_operand.hbm [shape: f32[8,256], index: 2, kind: input, shape index: {}]
  %s3 = inlined_call_operand.hbm [shape: f32[300,128], index: 3, kind: input, shape index: {}]
  %s4 = inlined_call_operand.hbm [shape: f32[40,128], index: 4, kind: input, shape index: {}]
  %s5 = inlined_call_operand.hbm [shape: f32[8,256], index: 5, kind: output, shape index: {0}]
  %s6 = inlined_call_operand.hbm [shape: f32[8,128], index: 6, kind: output, shape index: {1}]
  %s7 = inlined_call_operand.hbm [shape: f32[16,128], index: 7, kind: output, shape index: {2}]
  %8 = xla_tuple %s5, %s6, %s7
  %s9 = sld [smem:[#allocation0]]
  $region66: #{tpu_custom_call.1} parent=0
    _
  %s11 = ssub.s32 1, %s9
  %s12 = scalar_select 0, %s11, %s9
  $region1: #{tpu_custom_call.1} parent=0
    #allocation2 [shape = 'u8[512]{0}', space=smem, size = 0x200, scoped, tag = 'input window, operand 0, single buffered']
    #allocation3 [shape = 's32[1]{0}', space=sflag, size = 0x4, scoped, tag = 'scoped memory for tpu_custom_call.1']
    #allocation4 [shape = 's32[1]{0}', space=sflag, size = 0x4, scoped, tag = 'scoped memory for tpu_custom_call.1']
    #allocation5 [shape = 's32[1]{0}', space=sflag, size = 0x4, scoped, tag = 'scoped memory for tpu_custom_call.1']
    #allocation6 [shape = 's32[1]{0}', space=sflag, size = 0x4, scoped, tag = 'scoped memory for tpu_custom_call.1']
    #allocation7 [shape = 'u8[512]{0}', space=smem, size = 0x200, scoped, tag = 'input window, operand 1, single buffered']
    #allocation8 [shape = 'u8[8192]{0}', space=vmem, size = 0x2000, scoped, tag = 'input window, operand 2, single buffered']
    #allocation9 [shape = 'u8[155648]{0}', space=vmem, size = 0x26000, scoped, tag = 'input window, operand 3, single buffered']
    #allocation10 [shape = 's32[1]{0}', space=sflag, size = 0x4, scoped, tag = 'scoped memory for tpu_custom_call.1']
    #allocation11 [shape = 'u8[20480]{0}', space=vmem, size = 0x5000, scoped, tag = 'input window, operand 4, single buffered']
    #allocation12 [shape = 'u8[8192]{0}', space=vmem, size = 0x2000, scoped, tag = 'output window, operand 0, single buffered']
    #allocation13 [shape = 'u8[4096]{0}', space=vmem, size = 0x1000, scoped, tag = 'output window, operand 1, single buffered']
    #allocation14 [shape = 's32[1]{0}', space=sflag, size = 0x4, scoped, tag = 'scoped memory for tpu_custom_call.1']
    #allocation15 [shape = 'u8[8192]{0}', space=vmem, size = 0x2000, scoped, tag = 'output window, operand 2, single buffered']
    %13 = vsyncpa [#allocation5], 0
    %14 = vsyncpa [#allocation6], 0
    %15 = vsyncpa [#allocation3], 0
    %16 = vsyncpa [#allocation10], 0
    %17 = vsyncpa [#allocation4], 0
    %18 = vsyncpa [#allocation14], 0
    // Predicated region
    $region2: #{tpu_custom_call.1} parent=1 // pred_check
      _
    $region3: #{tpu_custom_call.1} parent=1 // pred_check_branch
      %20 = sbr.rel (0) target = $region5
    $region4: #{tpu_custom_call.1} parent=1 // pred_region
      %s22 = ssub.s32 16, 16
      %23 = vsyncadd [#allocation5], %s22
      %26 = dma.hbm_to_smem %s0, 16, [#allocation2], [#allocation5]
    $region5: #{tpu_custom_call.1} parent=1 // pred_fallthru
      _
    // Predicated region
    $region6: #{tpu_custom_call.1} parent=1 // pred_check
      _
    $region7: #{tpu_custom_call.1} parent=1 // pred_check_branch
      %28 = sbr.rel (0) target = $region9
    $region8: #{tpu_custom_call.1} parent=1 // pred_region
      %s30 = ssub.s32 16, 16
      %31 = vsyncadd [#allocation6], %s30
      %s33 = sshll.u32 %s1, 4
      %s34 = int_to_ptr.vmem [resolvable:$true] %s33
      %36 = dma.vmem_to_smem %s34, 16, [#allocation7], [#allocation6]
    $region9: #{tpu_custom_call.1} parent=1 // pred_fallthru
      _
    // Predicated region
    $region10: #{tpu_custom_call.1} parent=1 // pred_check
      _
    $region11: #{tpu_custom_call.1} parent=1 // pred_check_branch
      %38 = sbr.rel (0) target = $region13
    $region12: #{tpu_custom_call.1} parent=1 // pred_region
      %s40 = ssub.s32 256, 256
      %41 = vsyncadd [#allocation3], %s40
      %s43 = sshll.u32 [#allocation8], 4
      %s44 = int_to_ptr.vmem [resolvable:$true] %s43
      %46 = dma.hbm_to_vmem [thread:$0]  %s2, 256, %s44, [#allocation3]
    $region13: #{tpu_custom_call.1} parent=1 // pred_fallthru
      _
    // Predicated region
    $region14: #{tpu_custom_call.1} parent=1 // pred_check
      _
    $region15: #{tpu_custom_call.1} parent=1 // pred_check_branch
      %48 = sbr.rel (0) target = $region17
    $region16: #{tpu_custom_call.1} parent=1 // pred_region
      %s50 = ssub.s32 4864, 4864
      %51 = vsyncadd [#allocation10], %s50
      %s52 = sshll.u32 [#allocation9], 4
      %s53 = int_to_ptr.vmem [resolvable:$true] %s52
      %58 = dma.hbm_to_vmem [thread:$0]  %s3, 4864, %s53, [#allocation10], 128, 128, 8
    $region17: #{tpu_custom_call.1} parent=1 // pred_fallthru
      _
    // Predicated region
    $region18: #{tpu_custom_call.1} parent=1 // pred_check
      _
    $region19: #{tpu_custom_call.1} parent=1 // pred_check_branch
      %60 = sbr.rel (0) target = $region21
    $region20: #{tpu_custom_call.1} parent=1 // pred_region
      %s62 = ssub.s32 640, 640
      %63 = vsyncadd [#allocation10], %s62
      %s64 = sshll.u32 [#allocation11], 4
      %s65 = int_to_ptr.vmem [resolvable:$true] %s64
      %70 = dma.hbm_to_vmem [thread:$0]  %s4, 640, %s65, [#allocation10], 128, 128, 8
    $region21: #{tpu_custom_call.1} parent=1 // pred_fallthru
      _
    // Predicated region
    $region22: #{tpu_custom_call.1} parent=1 // pred_check
      _
    $region23: #{tpu_custom_call.1} parent=1 // pred_check_branch
      %72 = sbr.rel (0) target = $region25
    $region24: #{tpu_custom_call.1} parent=1 // pred_region
      %73 = dma.done [#allocation5], 16
    $region25: #{tpu_custom_call.1} parent=1 // pred_fallthru
      _
    // Predicated region
    $region26: #{tpu_custom_call.1} parent=1 // pred_check
      _
    $region27: #{tpu_custom_call.1} parent=1 // pred_check_branch
      %75 = sbr.rel (0) target = $region29
    $region28: #{tpu_custom_call.1} parent=1 // pred_region
      %76 = dma.done [#allocation6], 16
    $region29: #{tpu_custom_call.1} parent=1 // pred_fallthru
      _
    // Predicated region
    $region30: #{tpu_custom_call.1} parent=1 // pred_check
      _
    $region31: #{tpu_custom_call.1} parent=1 // pred_check_branch
      %78 = sbr.rel (0) target = $region33
    $region32: #{tpu_custom_call.1} parent=1 // pred_region
      %79 = dma.done [#allocation3], 256
    $region33: #{tpu_custom_call.1} parent=1 // pred_fallthru
      _
    // Predicated region
    $region34: #{tpu_custom_call.1} parent=1 // pred_check
      _
    $region35: #{tpu_custom_call.1} parent=1 // pred_check_branch
      %81 = sbr.rel (0) target = $region37
    $region36: #{tpu_custom_call.1} parent=1 // pred_region
      %82 = dma.done [#allocation10], 4864
    $region37: #{tpu_custom_call.1} parent=1 // pred_fallthru
      _
    // Predicated region
    $region38: #{tpu_custom_call.1} parent=1 // pred_check
      _
    $region39: #{tpu_custom_call.1} parent=1 // pred_check_branch
      %84 = sbr.rel (0) target = $region41
    $region40: #{tpu_custom_call.1} parent=1 // pred_region
      %85 = dma.done [#allocation10], 640
    $region41: #{tpu_custom_call.1} parent=1 // pred_fallthru
      _
    %86 = sfence
    %v87 = vld [vmem:[#allocation8] sm:$0xff]
    %v88 = vld [vmem:[#allocation8 + $0x8] sm:$0xff]
    %v89 = vmul.f32 %v87, %v87
    %v90 = vmul.f32 %v88, %v88
    %v91 = vadd.f32 %v89, %v90
    %92 = vadd.xlane.f32.xlu0 %v91
    %v93 = vpop.xlane.xlu0 %92
    %v94 = vmax.f32 %v93, 1e-24
    %v95 = vrsqrt.pop %v94
    %v96 = vmul.f32 %v87, %v95
    %v97 = vmul.f32 %v88, %v95
    %98 = vst [vmem:[#allocation12] sm:$0xff] %v96
    %99 = vst [vmem:[#allocation12 + $0x8] sm:$0xff] %v97
    %s100 = sld [smem:[#allocation2]]
    %s101 = scalar_lea.vmem [#allocation9], %s100
    %v102 = vld [vmem:[%s101] sm:$0x1]
    %103 = vst [vmem:[#allocation13] sm:$0x1] %v102
    %s104 = sld [smem:[#allocation2 + $0x1]]
    %s105 = scalar_lea.vmem [#allocation9], %s104
    %v106 = vld [vmem:[%s105] sm:$0x1]
    %107 = vst [vmem:[#allocation13 + $0x1] sm:$0x1] %v106
    %s108 = sld [smem:[#allocation2 + $0x2]]
    %s109 = scalar_lea.vmem [#allocation9], %s108
    %v110 = vld [vmem:[%s109] sm:$0x1]
    %111 = vst [vmem:[#allocation13 + $0x2] sm:$0x1] %v110
    %s112 = sld [smem:[#allocation2 + $0x3]]
    %s113 = scalar_lea.vmem [#allocation9], %s112
    %v114 = vld [vmem:[%s113] sm:$0x1]
    %115 = vst [vmem:[#allocation13 + $0x3] sm:$0x1] %v114
    %s116 = sld [smem:[#allocation2 + $0x4]]
    %s117 = scalar_lea.vmem [#allocation9], %s116
    %v118 = vld [vmem:[%s117] sm:$0x1]
    %119 = vst [vmem:[#allocation13 + $0x4] sm:$0x1] %v118
    %s120 = sld [smem:[#allocation2 + $0x5]]
    %s121 = scalar_lea.vmem [#allocation9], %s120
    %v122 = vld [vmem:[%s121] sm:$0x1]
    %123 = vst [vmem:[#allocation13 + $0x5] sm:$0x1] %v122
    %s124 = sld [smem:[#allocation2 + $0x6]]
    %s125 = scalar_lea.vmem [#allocation9], %s124
    %v126 = vld [vmem:[%s125] sm:$0x1]
    %127 = vst [vmem:[#allocation13 + $0x6] sm:$0x1] %v126
    %s128 = sld [smem:[#allocation2 + $0x7]]
    %s129 = scalar_lea.vmem [#allocation9], %s128
    %v130 = vld [vmem:[%s129] sm:$0x1]
    %131 = vst [vmem:[#allocation13 + $0x7] sm:$0x1] %v130
    %s132 = sld [smem:[#allocation7]]
    %s133 = scalar_lea.vmem [#allocation11], %s132
    %v134 = vld [vmem:[%s133] sm:$0x1]
    %135 = vst [vmem:[#allocation15] sm:$0x1] %v134
    %s136 = sld [smem:[#allocation7 + $0x1]]
    %s137 = scalar_lea.vmem [#allocation11], %s136
    %v138 = vld [vmem:[%s137] sm:$0x1]
    %139 = vst [vmem:[#allocation15 + $0x1] sm:$0x1] %v138
    %s140 = sld [smem:[#allocation7 + $0x2]]
    %s141 = scalar_lea.vmem [#allocation11], %s140
    %v142 = vld [vmem:[%s141] sm:$0x1]
    %143 = vst [vmem:[#allocation15 + $0x2] sm:$0x1] %v142
    %s144 = sld [smem:[#allocation7 + $0x3]]
    %s145 = scalar_lea.vmem [#allocation11], %s144
    %v146 = vld [vmem:[%s145] sm:$0x1]
    %147 = vst [vmem:[#allocation15 + $0x3] sm:$0x1] %v146
    %s148 = sld [smem:[#allocation7 + $0x4]]
    %s149 = scalar_lea.vmem [#allocation11], %s148
    %v150 = vld [vmem:[%s149] sm:$0x1]
    %151 = vst [vmem:[#allocation15 + $0x4] sm:$0x1] %v150
    %s152 = sld [smem:[#allocation7 + $0x5]]
    %s153 = scalar_lea.vmem [#allocation11], %s152
    %v154 = vld [vmem:[%s153] sm:$0x1]
    %155 = vst [vmem:[#allocation15 + $0x5] sm:$0x1] %v154
    %s156 = sld [smem:[#allocation7 + $0x6]]
    %s157 = scalar_lea.vmem [#allocation11], %s156
    %v158 = vld [vmem:[%s157] sm:$0x1]
    %159 = vst [vmem:[#allocation15 + $0x6] sm:$0x1] %v158
    %s160 = sld [smem:[#allocation7 + $0x7]]
    %s161 = scalar_lea.vmem [#allocation11], %s160
    %v162 = vld [vmem:[%s161] sm:$0x1]
    %163 = vst [vmem:[#allocation15 + $0x7] sm:$0x1] %v162
    %s164 = sld [smem:[#allocation7 + $0x8]]
    %s165 = scalar_lea.vmem [#allocation11], %s164
    %v166 = vld [vmem:[%s165] sm:$0x1]
    %167 = vst [vmem:[#allocation15 + $0x8] sm:$0x1] %v166
    %s168 = sld [smem:[#allocation7 + $0x9]]
    %s169 = scalar_lea.vmem [#allocation11], %s168
    %v170 = vld [vmem:[%s169] sm:$0x1]
    %171 = vst [vmem:[#allocation15 + $0x9] sm:$0x1] %v170
    %s172 = sld [smem:[#allocation7 + $0xa]]
    %s173 = scalar_lea.vmem [#allocation11], %s172
    %v174 = vld [vmem:[%s173] sm:$0x1]
    %175 = vst [vmem:[#allocation15 + $0xa] sm:$0x1] %v174
    %s176 = sld [smem:[#allocation7 + $0xb]]
    %s177 = scalar_lea.vmem [#allocation11], %s176
    %v178 = vld [vmem:[%s177] sm:$0x1]
    %179 = vst [vmem:[#allocation15 + $0xb] sm:$0x1] %v178
    %s180 = sld [smem:[#allocation7 + $0xc]]
    %s181 = scalar_lea.vmem [#allocation11], %s180
    %v182 = vld [vmem:[%s181] sm:$0x1]
    %183 = vst [vmem:[#allocation15 + $0xc] sm:$0x1] %v182
    %s184 = sld [smem:[#allocation7 + $0xd]]
    %s185 = scalar_lea.vmem [#allocation11], %s184
    %v186 = vld [vmem:[%s185] sm:$0x1]
    %187 = vst [vmem:[#allocation15 + $0xd] sm:$0x1] %v186
    %s188 = sld [smem:[#allocation7 + $0xe]]
    %s189 = scalar_lea.vmem [#allocation11], %s188
    %v190 = vld [vmem:[%s189] sm:$0x1]
    %191 = vst [vmem:[#allocation15 + $0xe] sm:$0x1] %v190
    %s192 = sld [smem:[#allocation7 + $0xf]]
    %s193 = scalar_lea.vmem [#allocation11], %s192
    %v194 = vld [vmem:[%s193] sm:$0x1]
    %195 = vst [vmem:[#allocation15 + $0xf] sm:$0x1] %v194
    // Predicated region
    $region42: #{tpu_custom_call.1} parent=1 // pred_check
      _
    $region43: #{tpu_custom_call.1} parent=1 // pred_check_branch
      %197 = sbr.rel (0) target = $region45
    $region44: #{tpu_custom_call.1} parent=1 // pred_region
      %s199 = ssub.s32 256, 256
      %200 = vsyncadd [#allocation4], %s199
      %s202 = sshll.u32 [#allocation12], 4
      %s203 = int_to_ptr.vmem [resolvable:$true] %s202
      %205 = dma.vmem_to_hbm [thread:$0]  %s203, 256, %s5, [#allocation4]
    $region45: #{tpu_custom_call.1} parent=1 // pred_fallthru
      _
    // Predicated region
    $region46: #{tpu_custom_call.1} parent=1 // pred_check
      _
    $region47: #{tpu_custom_call.1} parent=1 // pred_check_branch
      %207 = sbr.rel (0) target = $region49
    $region48: #{tpu_custom_call.1} parent=1 // pred_region
      %s209 = ssub.s32 128, 128
      %210 = vsyncadd [#allocation14], %s209
      %s212 = sshll.u32 [#allocation13], 4
      %s213 = int_to_ptr.vmem [resolvable:$true] %s212
      %215 = dma.vmem_to_hbm [thread:$0]  %s213, 128, %s6, [#allocation14]
    $region49: #{tpu_custom_call.1} parent=1 // pred_fallthru
      _
    // Predicated region
    $region50: #{tpu_custom_call.1} parent=1 // pred_check
      _
    $region51: #{tpu_custom_call.1} parent=1 // pred_check_branch
      %217 = sbr.rel (0) target = $region53
    $region52: #{tpu_custom_call.1} parent=1 // pred_region
      %s219 = ssub.s32 256, 256
      %220 = vsyncadd [#allocation14], %s219
      %s221 = sshll.u32 [#allocation15], 4
      %s222 = int_to_ptr.vmem [resolvable:$true] %s221
      %227 = dma.vmem_to_hbm [thread:$0]  %s222, 256, %s7, [#allocation14], 128, 128, 8
    $region53: #{tpu_custom_call.1} parent=1 // pred_fallthru
      _
    // Predicated region
    $region54: #{tpu_custom_call.1} parent=1 // pred_check
      _
    $region55: #{tpu_custom_call.1} parent=1 // pred_check_branch
      %229 = sbr.rel (0) target = $region57
    $region56: #{tpu_custom_call.1} parent=1 // pred_region
      %230 = dma.done [#allocation4], 256
    $region57: #{tpu_custom_call.1} parent=1 // pred_fallthru
      _
    // Predicated region
    $region58: #{tpu_custom_call.1} parent=1 // pred_check
      _
    $region59: #{tpu_custom_call.1} parent=1 // pred_check_branch
      %232 = sbr.rel (0) target = $region61
    $region60: #{tpu_custom_call.1} parent=1 // pred_region
      %233 = dma.done [#allocation14], 128
    $region61: #{tpu_custom_call.1} parent=1 // pred_fallthru
      _
    // Predicated region
    $region62: #{tpu_custom_call.1} parent=1 // pred_check
      _
    $region63: #{tpu_custom_call.1} parent=1 // pred_check_branch
      %235 = sbr.rel (0) target = $region65
    $region64: #{tpu_custom_call.1} parent=1 // pred_region
      %236 = dma.done [#allocation14], 256
    $region65: #{tpu_custom_call.1} parent=1 // pred_fallthru
      _
    %237 = vsyncpa [#allocation3], 1
    %238 = vsyncpa [#allocation10], 1
    %239 = vsyncpa [#allocation4], 1
    %240 = vsyncpa [#allocation14], 1
    %241 = vsyncpa [#allocation5], 1
    %242 = vsyncpa [#allocation6], 1

</llo_original>
